<compile_context>
chip_gen: v6e
topology: v6e:2x2x1
jax: 0.10.0
libtpu: 0.0.40
codegen_flags: <defaults>
</compile_context>

<pallas_src>
import functools
import math

import jax
import jax.numpy as jnp
from jax.experimental import pallas as pl
from jax.experimental.pallas import tpu as pltpu

_LN2 = math.log(2.0)


def _contrastive_loss_kernel(x_ref, o_ref, acc_ref, *, tau, normalize, feat):
    """Processes one (tb, 4*F) batch tile.

    Grid is (chunks, steps): axis 0 ("parallel") splits the batch across
    TensorCores, axis 1 ("arbitrary") streams the tiles of one chunk while
    carrying the per-row loss accumulator in VMEM scratch.
    """
    s = pl.program_id(1)

    @pl.when(s == 0)
    def _():
        acc_ref[...] = jnp.zeros_like(acc_ref)

    x = x_ref[...].astype(jnp.float32)  # (tb, 4F), lane-dense
    F = feat
    p1 = x[:, 0 * F:1 * F]
    p2 = x[:, 1 * F:2 * F]
    n1 = x[:, 2 * F:3 * F]
    n2 = x[:, 3 * F:4 * F]

    if normalize:
        # torch.nn.functional.normalize(v, dim=-1): v / max(||v||_2, 1e-12)
        def _norm(v):
            nrm = jnp.sqrt(jnp.sum(v * v, axis=-1, keepdims=True))
            return v / jnp.maximum(nrm, 1e-12)

        p1 = _norm(p1)
        p2 = _norm(p2)
        n1 = _norm(n1)
        n2 = _norm(n2)

    inv_tau = jnp.float32(1.0 / tau)
    # Row-wise dot products (kept 2-D: (tb, 1)); VPU multiply + lane reduce.
    d_p = jnp.sum(p1 * p2, axis=-1, keepdims=True) * inv_tau
    d_n1 = jnp.sum(p1 * n1, axis=-1, keepdims=True) * inv_tau
    d_n2 = jnp.sum(p1 * n2, axis=-1, keepdims=True) * inv_tau
    d_n21 = jnp.sum(p2 * n1, axis=-1, keepdims=True) * inv_tau
    d_n22 = jnp.sum(p2 * n2, axis=-1, keepdims=True) * inv_tau

    # loss = -log(2*e^{d_p} / (2*e^{d_p} + e^{d_n1} + e^{d_n2} + e^{d_n21} + e^{d_n22}))
    #      = logsumexp([d_p + ln2, d_n1, d_n2, d_n21, d_n22]) - ln2 - d_p
    ln2 = jnp.float32(_LN2)
    terms = jnp.concatenate([d_p + ln2, d_n1, d_n2, d_n21, d_n22], axis=-1)  # (tb, 5)
    m = jnp.max(terms, axis=-1, keepdims=True)
    lse = m + jnp.log(jnp.sum(jnp.exp(terms - m), axis=-1, keepdims=True))
    loss = lse - ln2 - d_p  # (tb, 1)

    # Pure elementwise accumulation; full reduce deferred to the last step.
    acc_ref[...] = acc_ref[...] + loss

    @pl.when(s == pl.num_programs(1) - 1)
    def _():
        partial = jnp.sum(acc_ref[...])
        # Fill the whole (1, 8, 128) output block with the chunk's partial sum
        # (lane/sublane-aligned store; caller reads element [p, 0, 0]).
        o_ref[...] = jnp.full(o_ref.shape, partial, dtype=o_ref.dtype)


def _pick_batch_tile(B, row_bytes, target_bytes):
    """Largest multiple-of-8 divisor of B whose block fits the byte target;
    if the whole batch fits, use a single block."""
    max_rows = max(8, int(target_bytes // max(row_bytes, 1)))
    if B <= max_rows:
        return B
    tb = (max_rows // 8) * 8
    while tb >= 8:
        if B % tb == 0:
            return tb
        tb -= 8
    # TODO(synk): pad + mask ragged batches instead of falling back to one block.
    return B


def contrastive_loss(x, *, tau=1.0, normalize=False, batch_tile=None,
                     block_bytes_target=4 * 1024 * 1024):
    """Pallas implementation of ContrastiveLoss.forward.

    Args:
      x: [batch, 4, features] (float32 or bfloat16; upcast to f32 in-kernel).
    Returns:
      f32 scalar loss (mean over batch).
    """
    B, S, F = x.shape
    assert S == 4, "Input tensor must have 4 samples per batch (p1, p2, n1, n2)."

    # Lane-dense layout: [B, 4F]; the reshape is free (contiguous).
    x2 = x.reshape(B, S * F)
    row_bytes = S * F * x2.dtype.itemsize

    if batch_tile is not None:
        tb = int(batch_tile)
        assert B % tb == 0, "batch must be divisible by batch_tile"
        assert tb == B or tb % 8 == 0, "batch_tile must be a multiple of 8 (or the full batch)"
    else:
        tb = _pick_batch_tile(B, row_bytes, block_bytes_target)

    num_blocks = B // tb
    # Two parallel chunks so v7x's two TensorCores both participate; no-op on
    # single-TC chips (the outer axis just iterates).
    chunks = 2 if (num_blocks >= 2 and num_blocks % 2 == 0) else 1
    steps = num_blocks // chunks

    block_bytes = tb * row_bytes
    # Double-buffered input + (tb,1) accumulator + output blocks + margin.
    vmem_need = 2 * block_bytes + 2 * tb * 512 + (2 << 20)
    vmem_limit = int(max(vmem_need, 24 << 20))  # well under v7x's 64 MiB physical

    kernel = functools.partial(
        _contrastive_loss_kernel,
        tau=float(tau),
        normalize=bool(normalize),
        feat=F,
    )

    out = pl.pallas_call(
        kernel,
        out_shape=jax.ShapeDtypeStruct((chunks, 8, 128), jnp.float32),
        grid_spec=pltpu.PrefetchScalarGridSpec(
            num_scalar_prefetch=0,
            grid=(chunks, steps),
            in_specs=[
                pl.BlockSpec((tb, S * F), lambda p, s: (p * steps + s, 0)),
            ],
            out_specs=pl.BlockSpec((1, 8, 128), lambda p, s: (p, 0, 0)),
            scratch_shapes=[pltpu.VMEM((tb, 1), jnp.float32)],
        ),
        compiler_params=pltpu.CompilerParams(
            dimension_semantics=("parallel", "arbitrary"),
            vmem_limit_bytes=vmem_limit,
        ),
    )(x2)

    partials = out[:, 0, 0]  # one partial sum per chunk
    return jnp.sum(partials) / jnp.float32(B)


def _reference(x, tau=1.0, normalize=False):
    """Pure-JAX reference mirroring the PyTorch forward."""
    p1, p2, n1, n2 = x[:, 0, :], x[:, 1, :], x[:, 2, :], x[:, 3, :]
    if normalize:
        def _norm(v):
            nrm = jnp.linalg.norm(v, axis=-1, keepdims=True)
            return v / jnp.maximum(nrm, 1e-12)
        p1, p2, n1, n2 = _norm(p1), _norm(p2), _norm(n1), _norm(n2)
    sim_p = jnp.exp(jnp.sum(p1 * p2, -1) / tau)
    sim_n1 = jnp.exp(jnp.sum(p1 * n1, -1) / tau)
    sim_n2 = jnp.exp(jnp.sum(p1 * n2, -1) / tau)
    sim_n21 = jnp.exp(jnp.sum(p2 * n1, -1) / tau)
    sim_n22 = jnp.exp(jnp.sum(p2 * n2, -1) / tau)
    denom = 2 * sim_p + sim_n1 + sim_n2 + sim_n21 + sim_n22
    return jnp.mean(-jnp.log(2 * sim_p / denom))


if __name__ == "__main__":
    key = jax.random.PRNGKey(0)
    B, S, F = 64, 4, 32
    x = jax.random.normal(key, (B, S, F), dtype=jnp.float32)

    # Multi-block path: grid (2 parallel chunks, 2 sequential steps).
    loss = jax.block_until_ready(
        contrastive_loss(x, tau=1.0, normalize=False, batch_tile=16)
    )
    ref = _reference(x, tau=1.0, normalize=False)
    assert jnp.allclose(loss, ref, rtol=1e-5, atol=1e-5), (loss, ref)

    # Auto-tiled path (single block) + normalize=True, tau != 1.
    loss_n = jax.block_until_ready(contrastive_loss(x, tau=0.5, normalize=True))
    ref_n = _reference(x, tau=0.5, normalize=True)
    assert jnp.allclose(loss_n, ref_n, rtol=1e-5, atol=1e-5), (loss_n, ref_n)

    print("KERNEL_OK")
</pallas_src>

<mosaic_0001>
module attributes {stable_mosaic.version = 11 : i64} {
  func.func @_contrastive_loss_kernel(%arg0: i32, %arg1: i32, %arg2: memref<16x128xf32, #tpu.memory_space<vmem>>, %arg3: memref<1x8x128xf32, #tpu.memory_space<vmem>>, %arg4: memref<16x1xf32, #tpu.memory_space<vmem>>) attributes {dimension_semantics = [#tpu.dimension_semantics<parallel>, #tpu.dimension_semantics<arbitrary>], iteration_bounds = array<i64: 2, 2>, scalar_prefetch = 0 : i64, scratch_operands = 1 : i64, tpu.core_type = #tpu.core_type<tc>, window_params = [{transform_indices = @transform_0, window_bounds = array<i64: 16, 128>}, {transform_indices = @transform_1, window_bounds = array<i64: 1, 8, 128>}]} {
    %c0_i32 = arith.constant 0 : i32
    %0 = arith.cmpi eq, %arg1, %c0_i32 : i32
    %1 = arith.extui %0 : i1 to i32
    %c0_i32_0 = arith.constant 0 : i32
    %2 = arith.cmpi ne, %1, %c0_i32_0 : i32
    scf.if %2 {
      %cst_20 = arith.constant 0.000000e+00 : f32
      %54 = vector.broadcast %cst_20 : f32 to vector<16x1xf32>
      %c0_21 = arith.constant 0 : index
      %c0_22 = arith.constant 0 : index
      %55 = vector.load %arg4[%c0_21, %c0_22] : memref<16x1xf32, #tpu.memory_space<vmem>>, vector<16x1xf32>
      tpu.vector_store %arg4[%c0_21, %c0_22], %54 {strides = array<i32>} : memref<16x1xf32, #tpu.memory_space<vmem>>, vector<16x1xf32>,
    } else {
    }
    %c0 = arith.constant 0 : index
    %c0_1 = arith.constant 0 : index
    %3 = vector.load %arg2[%c0, %c0_1] : memref<16x128xf32, #tpu.memory_space<vmem>>, vector<16x128xf32>
    %4 = vector.extract_strided_slice %3 {offsets = [0, 0], sizes = [16, 32], strides = [1, 1]} : vector<16x128xf32> to vector<16x32xf32>
    %5 = vector.extract_strided_slice %3 {offsets = [0, 32], sizes = [16, 32], strides = [1, 1]} : vector<16x128xf32> to vector<16x32xf32>
    %6 = vector.extract_strided_slice %3 {offsets = [0, 64], sizes = [16, 32], strides = [1, 1]} : vector<16x128xf32> to vector<16x32xf32>
    %7 = vector.extract_strided_slice %3 {offsets = [0, 96], sizes = [16, 32], strides = [1, 1]} : vector<16x128xf32> to vector<16x32xf32>
    %8 = arith.mulf %4, %5 : vector<16x32xf32>
    %cst = arith.constant dense<0.000000e+00> : vector<16xf32>
    %9 = vector.multi_reduction <add>, %8, %cst [1] : vector<16x32xf32> to vector<16xf32>
    %10 = vector.shape_cast %9 : vector<16xf32> to vector<16x1xf32>
    %cst_2 = arith.constant 1.000000e+00 : f32
    %11 = vector.broadcast %cst_2 : f32 to vector<16x1xf32>
    %12 = arith.mulf %10, %11 : vector<16x1xf32>
    %13 = arith.mulf %4, %6 : vector<16x32xf32>
    %cst_3 = arith.constant dense<0.000000e+00> : vector<16xf32>
    %14 = vector.multi_reduction <add>, %13, %cst_3 [1] : vector<16x32xf32> to vector<16xf32>
    %15 = vector.shape_cast %14 : vector<16xf32> to vector<16x1xf32>
    %cst_4 = arith.constant 1.000000e+00 : f32
    %16 = vector.broadcast %cst_4 : f32 to vector<16x1xf32>
    %17 = arith.mulf %15, %16 : vector<16x1xf32>
    %18 = arith.mulf %4, %7 : vector<16x32xf32>
    %cst_5 = arith.constant dense<0.000000e+00> : vector<16xf32>
    %19 = vector.multi_reduction <add>, %18, %cst_5 [1] : vector<16x32xf32> to vector<16xf32>
    %20 = vector.shape_cast %19 : vector<16xf32> to vector<16x1xf32>
    %cst_6 = arith.constant 1.000000e+00 : f32
    %21 = vector.broadcast %cst_6 : f32 to vector<16x1xf32>
    %22 = arith.mulf %20, %21 : vector<16x1xf32>
    %23 = arith.mulf %5, %6 : vector<16x32xf32>
    %cst_7 = arith.constant dense<0.000000e+00> : vector<16xf32>
    %24 = vector.multi_reduction <add>, %23, %cst_7 [1] : vector<16x32xf32> to vector<16xf32>
    %25 = vector.shape_cast %24 : vector<16xf32> to vector<16x1xf32>
    %cst_8 = arith.constant 1.000000e+00 : f32
    %26 = vector.broadcast %cst_8 : f32 to vector<16x1xf32>
    %27 = arith.mulf %25, %26 : vector<16x1xf32>
    %28 = arith.mulf %5, %7 : vector<16x32xf32>
    %cst_9 = arith.constant dense<0.000000e+00> : vector<16xf32>
    %29 = vector.multi_reduction <add>, %28, %cst_9 [1] : vector<16x32xf32> to vector<16xf32>
    %30 = vector.shape_cast %29 : vector<16xf32> to vector<16x1xf32>
    %cst_10 = arith.constant 1.000000e+00 : f32
    %31 = vector.broadcast %cst_10 : f32 to vector<16x1xf32>
    %32 = arith.mulf %30, %31 : vector<16x1xf32>
    %cst_11 = arith.constant 0.693147182 : f32
    %33 = vector.broadcast %cst_11 : f32 to vector<16x1xf32>
    %34 = arith.addf %12, %33 : vector<16x1xf32>
    %35 = tpu.concatenate %34, %17, %22, %27, %32 in 1 : vector<16x1xf32>, vector<16x1xf32>, vector<16x1xf32>, vector<16x1xf32>, vector<16x1xf32> -> vector<16x5xf32>
    %cst_12 = arith.constant dense<0xFF800000> : vector<16xf32>
    %36 = vector.multi_reduction <maximumf>, %35, %cst_12 [1] : vector<16x5xf32> to vector<16xf32>
    %37 = vector.shape_cast %36 : vector<16xf32> to vector<16x1xf32>
    %38 = vector.broadcast %37 : vector<16x1xf32> to vector<16x5xf32>
    %39 = arith.subf %35, %38 : vector<16x5xf32>
    %40 = math.exp %39 : vector<16x5xf32>
    %cst_13 = arith.constant dense<0.000000e+00> : vector<16xf32>
    %41 = vector.multi_reduction <add>, %40, %cst_13 [1] : vector<16x5xf32> to vector<16xf32>
    %42 = vector.shape_cast %41 : vector<16xf32> to vector<16x1xf32>
    %43 = math.log %42 : vector<16x1xf32>
    %44 = arith.addf %37, %43 : vector<16x1xf32>
    %cst_14 = arith.constant 0.693147182 : f32
    %45 = vector.broadcast %cst_14 : f32 to vector<16x1xf32>
    %46 = arith.subf %44, %45 : vector<16x1xf32>
    %47 = arith.subf %46, %12 : vector<16x1xf32>
    %c0_15 = arith.constant 0 : index
    %c0_16 = arith.constant 0 : index
    %48 = vector.load %arg4[%c0_15, %c0_16] : memref<16x1xf32, #tpu.memory_space<vmem>>, vector<16x1xf32>
    %49 = arith.addf %48, %47 : vector<16x1xf32>
    %c0_17 = arith.constant 0 : index
    %c0_18 = arith.constant 0 : index
    %50 = vector.load %arg4[%c0_17, %c0_18] : memref<16x1xf32, #tpu.memory_space<vmem>>, vector<16x1xf32>
    tpu.vector_store %arg4[%c0_17, %c0_18], %49 {strides = array<i32>} : memref<16x1xf32, #tpu.memory_space<vmem>>, vector<16x1xf32>,
    %c1_i32 = arith.constant 1 : i32
    %51 = arith.cmpi eq, %arg1, %c1_i32 : i32
    %52 = arith.extui %51 : i1 to i32
    %c0_i32_19 = arith.constant 0 : i32
    %53 = arith.cmpi ne, %52, %c0_i32_19 : i32
    scf.if %53 {
      %c0_20 = arith.constant 0 : index
      %c0_21 = arith.constant 0 : index
      %54 = vector.load %arg4[%c0_20, %c0_21] : memref<16x1xf32, #tpu.memory_space<vmem>>, vector<16x1xf32>
      %55 = vector.shape_cast %54 : vector<16x1xf32> to vector<1x16x1xf32>
      %cst_22 = arith.constant dense<0.000000e+00> : vector<1xf32>
      %56 = vector.multi_reduction <add>, %55, %cst_22 [1, 2] : vector<1x16x1xf32> to vector<1xf32>
      %57 = vector.shape_cast %56 : vector<1xf32> to vector<1x1x1xf32>
      %58 = vector.extract %57[0, 0, 0] : f32 from vector<1x1x1xf32>
      %59 = vector.broadcast %58 : f32 to vector<1x8x128xf32>
      %c0_23 = arith.constant 0 : index
      %c0_24 = arith.constant 0 : index
      %c0_25 = arith.constant 0 : index
      %60 = vector.load %arg3[%c0_23, %c0_24, %c0_25] : memref<1x8x128xf32, #tpu.memory_space<vmem>>, vector<1x8x128xf32>
      tpu.vector_store %arg3[%c0_23, %c0_24, %c0_25], %59 {strides = array<i32>} : memref<1x8x128xf32, #tpu.memory_space<vmem>>, vector<1x8x128xf32>,
    } else {
    }
    return
  }
  func.func @transform_0(%arg0: i32, %arg1: i32) -> (i32, i32) {
    %c2_i32 = arith.constant 2 : i32
    %0 = arith.muli %arg0, %c2_i32 : i32
    %1 = arith.addi %0, %arg1 : i32
    %c0_i32 = arith.constant 0 : i32
    %c0_i32_0 = arith.constant 0 : i32
    return %1, %c0_i32 : i32, i32
  }
  func.func @transform_1(%arg0: i32, %arg1: i32) -> (i32, i32, i32) {
    %c0_i32 = arith.constant 0 : i32
    %c0_i32_0 = arith.constant 0 : i32
    %c0_i32_1 = arith.constant 0 : i32
    return %arg0, %c0_i32, %c0_i32_0 : i32, i32, i32
  }
}

</mosaic_0001>

<llo_original>
// kernel: tpu_custom_call.1
$region0: #{tpu_custom_call.1}
  #allocation0 [shape = 'u32[]', space=smem, size = 0x4, offset = 0x4, fixed_abs, tag = 'smem constant byte address 0x4 - core index']
  #allocation1 [shape = 'u32[144,128]{1,0:T(1,128)}', space=vmem, size = 0x12000, scoped, tag = 'internal scratch']
  #allocation2 [shape = 'f32[16,1]{1,0:T(8,128)}', space=vmem, size = 0x2000, scoped, tag = 'scratch operand']
  %s0 = inlined_call_operand.hbm [shape: f32[64,128], index: 0, kind: input, shape index: {}]
  %s1 = inlined_call_operand.hbm [shape: f32[2,8,128], index: 1, kind: output, shape index: {}]
  %s2 = sld [smem:[#allocation0]]
  $region49: #{tpu_custom_call.1} parent=0
    _
  %s4 = ssub.s32 1, %s2
  %s5 = scalar_select 0, %s4, %s2
  $region1: #{tpu_custom_call.1} parent=0
    #allocation3 [shape = 'u8[16384]{0}', space=vmem, size = 0x4000, scoped, tag = 'input window, operand 0']
    #allocation4 [shape = 's32[2]{0}', space=sflag, size = 0x8, scoped, tag = 'scoped memory for tpu_custom_call.1']
    #allocation5 [shape = 's32[2]{0}', space=sflag, size = 0x8, scoped, tag = 'scoped memory for tpu_custom_call.1']
    #allocation6 [shape = 'u8[8192]{0}', space=vmem, size = 0x2000, scoped, tag = 'output window, operand 0']
    %6 = vsyncpa [#allocation4], 0
    %s7 = scalar_lea.sflag [#allocation4], 1
    %8 = vsyncpa %s7, 0
    %9 = vsyncpa [#allocation5], 0
    %s10 = scalar_lea.sflag [#allocation5], 1
    %11 = vsyncpa %s10, 0
    loop: start=0, step=1, limit=6
    $region2: #{tpu_custom_call.1} parent=1 // loop_pre_header
      _
    $region3: #{tpu_custom_call.1} parent=1 // loop_header
      %s13 = sphi 0, %s17
      %p14 = scmp.ge.s32.totalorder %s13, 6
      %s20 = sphi 0, %s32
      %s21 = sphi 0, %s28
      %s22 = sphi 0, %s20
      %s23 = sphi 0, %s21
      %s24 = sphi 0, %s22
      %s25 = sphi 0, %s23
      %s39 = sphi 0, %s41
      %s42 = sphi 0, %s39
      %s43 = sphi 0, %s42
      %s59 = sphi 0, %s43
      %s65 = sphi 0, %s67
      %s68 = sphi 0, %s65
      %s69 = sphi 0, %s68
      %s85 = sphi 0, %s69
    $region4: #{tpu_custom_call.1} parent=1 // loop_header_branch
      %16 = sbr.rel (%p14) target = $region8
    $region5: #{tpu_custom_call.1} parent=1 // loop_body
      %s18 = ssub.s32 %s13, 1
      %s19 = ssub.s32 %s13, 2
      %s26 = sadd.s32 1, %s21
      %p27 = scmp.ge.s32.totalorder %s26, 2
      %s28 = scalar_select %p27, 0, %s26
      %s29 = sadd.s32 1, %s20
      %s30 = scalar_select %p27, %s29, %s20
      %p31 = scmp.ge.s32.totalorder %s30, 2
      %s32 = scalar_select %p31, 0, %s30
      %s33 = smul.u32 %s20, 2
      %s34 = sadd.s32 %s33, %s21
      %s35 = smul.u32 %s32, 2
      %s36 = sadd.s32 %s35, %s28
      %s37 = ssub.s32 %s34, %s36
      %p38 = scmp.eq.s32.totalorder %s37, 0
      %s40 = sadd.s32 %s39, 1
      %s41 = scalar_select %p38, %s39, %s40
      %p44 = pneg %p38
      %p45 = scmp.eq.s32.totalorder %s13, 3
      %p46 = por %p44, %p45
      %p47 = scmp.ne.s32.totalorder %s39, %s42
      %p48 = scmp.eq.s32.totalorder %s13, 0
      %p49 = por %p47, %p48
      %p50 = scmp.ne.s32.totalorder %s39, %s42
      %p51 = scmp.eq.s32.totalorder %s18, 3
      %p52 = por %p50, %p51
      %p53 = scmp.ne.s32.totalorder %s42, %s43
      %p54 = scmp.eq.s32.totalorder %s18, 0
      %p55 = por %p53, %p54
      %p56 = scmp.ne.s32.totalorder %s42, %s43
      %p57 = scmp.eq.s32.totalorder %s19, 3
      %p58 = por %p56, %p57
      %p60 = scmp.ne.s32.totalorder %s43, %s59
      %p61 = scmp.eq.s32.totalorder %s19, 0
      %p62 = por %p60, %p61
      %s63 = ssub.s32 %s20, %s32
      %p64 = scmp.eq.s32.totalorder %s63, 0
      %s66 = sadd.s32 %s65, 1
      %s67 = scalar_select %p64, %s65, %s66
      %p70 = pneg %p64
      %p71 = scmp.eq.s32.totalorder %s13, 3
      %p72 = por %p70, %p71
      %p73 = scmp.ne.s32.totalorder %s65, %s68
      %p74 = scmp.eq.s32.totalorder %s13, 0
      %p75 = por %p73, %p74
      %p76 = scmp.ne.s32.totalorder %s65, %s68
      %p77 = scmp.eq.s32.totalorder %s18, 3
      %p78 = por %p76, %p77
      %p79 = scmp.ne.s32.totalorder %s68, %s69
      %p80 = scmp.eq.s32.totalorder %s18, 0
      %p81 = por %p79, %p80
      %p82 = scmp.ne.s32.totalorder %s68, %s69
      %p83 = scmp.eq.s32.totalorder %s19, 3
      %p84 = por %p82, %p83
      %p86 = scmp.ne.s32.totalorder %s69, %s85
      %p87 = scmp.eq.s32.totalorder %s19, 0
      %p88 = por %p86, %p87
      %p89 = scmp.le.s32.totalorder 1, %s13
      %p90 = scmp.lt.s32.totalorder %s13, 5
      %p91 = pnand %p89, %p90
      %p92 = pneg %p91
      // Predicated region
      $region9: #{tpu_custom_call.1} parent=5 // pred_check
        _
      $region10: #{tpu_custom_call.1} parent=5 // pred_check_branch
        %94 = sbr.rel (%p91) target = $region12
      $region11: #{tpu_custom_call.1} parent=5 // pred_region
        %s95 = ssub.s32 %s13, 1
      $region12: #{tpu_custom_call.1} parent=5 // pred_fallthru
        _
      %p96 = scmp.lt.s32.totalorder %s13, 4
      // Predicated region
      $region13: #{tpu_custom_call.1} parent=5 // pred_check
        %p97 = pneg %p96
      $region14: #{tpu_custom_call.1} parent=5 // pred_check_branch
        %99 = sbr.rel (%p97) target = $region16
      $region15: #{tpu_custom_call.1} parent=5 // pred_region
        // Predicated region
        $region17: #{tpu_custom_call.1} parent=15 // pred_check
          %p100 = pneg %p49
        $region18: #{tpu_custom_call.1} parent=15 // pred_check_branch
          %102 = sbr.rel (%p100) target = $region20
        $region19: #{tpu_custom_call.1} parent=15 // pred_region
          %s103 = sand.u32 %s39, 1
          %s104 = scalar_lea.sflag [#allocation4], %s103
          %s105 = sand.u32 %s39, 1
          %s106 = smul.addr %s105, 16
          %s107 = scalar_lea.vmem [#allocation3], %s106
          %s108 = smul.u32 %s20, 2
          %s109 = sadd.s32 %s108, %s21
          %s110 = smul.u32 2, %s109
          %s112 = ssub.s32 256, 256
          %113 = vsyncadd %s104, %s112
          %s114 = smul.addr %s110, 128
          %s115 = scalar_lea.hbm %s0, %s114
          %s116 = sshll.u32 %s107, 4
          %s117 = int_to_ptr.vmem [resolvable:$true] %s116
          %122 = dma.hbm_to_vmem [thread:$0]  %s115, 256, %s117, %s104, 128, 128, 8
        $region20: #{tpu_custom_call.1} parent=15 // pred_fallthru
          _
      $region16: #{tpu_custom_call.1} parent=5 // pred_fallthru
        _
      %p123 = scmp.le.s32.totalorder 1, %s13
      %p124 = scmp.lt.s32.totalorder %s13, 5
      %p125 = pnand %p123, %p124
      %p126 = pneg %p125
      // Predicated region
      $region21: #{tpu_custom_call.1} parent=5 // pred_check
        _
      $region22: #{tpu_custom_call.1} parent=5 // pred_check_branch
        %128 = sbr.rel (%p125) target = $region24
      $region23: #{tpu_custom_call.1} parent=5 // pred_region
        %s129 = ssub.s32 %s13, 1
        %s130 = sand.u32 %s42, 1
        %s131 = scalar_lea.sflag [#allocation4], %s130
        %s132 = sand.u32 %s42, 1
        %s133 = smul.addr %s132, 16
        %s134 = scalar_lea.vmem [#allocation3], %s133
        // Predicated region
        $region25: #{tpu_custom_call.1} parent=23 // pred_check
          %p135 = pneg %p55
        $region26: #{tpu_custom_call.1} parent=23 // pred_check_branch
          %137 = sbr.rel (%p135) target = $region28
        $region27: #{tpu_custom_call.1} parent=23 // pred_region
          %138 = dma.done %s131, 256
        $region28: #{tpu_custom_call.1} parent=23 // pred_fallthru
          _
        %s139 = sand.u32 %s42, 1
        %s140 = scalar_lea.sflag [#allocation4], %s139
        %s141 = sand.u32 %s42, 1
        %s142 = smul.addr %s141, 16
        %s143 = scalar_lea.vmem [#allocation3], %s142
        %p144 = pneg %p55
        %p145 = pneg %p52
        %p146 = pneg %p81
        %p147 = pneg %p78
        %s148 = sand.u32 %s68, 1
        %s149 = scalar_lea.sflag [#allocation5], %s148
        %s150 = sand.u32 %s68, 1
        %s151 = smul.addr %s150, 8
        %s152 = scalar_lea.vmem [#allocation6], %s151
        %s153 = smul.u32 %s22, 2
        %s154 = sadd.s32 %s153, %s23
        %s155 = smul.u32 2, %s154
        %p156 = scmp.eq.s32.totalorder %s23, 0
        // Predicated region
        $region29: #{tpu_custom_call.1} parent=23 // pred_check
          %p157 = pneg %p156
        $region30: #{tpu_custom_call.1} parent=23 // pred_check_branch
          %159 = sbr.rel (%p157) target = $region32
        $region31: #{tpu_custom_call.1} parent=23 // pred_region
          %vm160 = vcmask 7168
          %161 = vst.msk [vmem:[#allocation2] sm:$0xff] %vm160, 0.0
          %162 = vst.msk [vmem:[#allocation2 + $0x8] sm:$0xff] %vm160, 0.0
        $region32: #{tpu_custom_call.1} parent=23 // pred_fallthru
          _
        %v163 = vld [vmem:[%s134] sm:$0xff]
        %v164 = vld [vmem:[%s134 + $0x8] sm:$0xff]
        %167 = vrot.lane.b32.xlu0 %v163, 96
        %v168 = vpop.permute.xlu0 %167
        %169 = vrot.lane.b32.xlu0 %v164, 96
        %v170 = vpop.permute.xlu0 %169
        %v173 = vmul.f32 %v163, %v168
        %v174 = vmul.f32 %v164, %v170
        %vm175 = vcmask 261120
        %v176 = vsel %vm175, %v173, 0.0
        %177 = vadd.xlane.f32.xlu0 %v176
        %v178 = vpop.xlane.xlu0 %177
        %v179 = vsel %vm175, %v174, 0.0
        %180 = vadd.xlane.f32.xlu0 %v179
        %v181 = vpop.xlane.xlu0 %180
        %182 = vrot.lane.b32.xlu0 %v163, 64
        %v183 = vpop.permute.xlu0 %182
        %184 = vrot.lane.b32.xlu0 %v164, 64
        %v185 = vpop.permute.xlu0 %184
        %v188 = vmul.f32 %v163, %v183
        %v189 = vmul.f32 %v164, %v185
        %v190 = vsel %vm175, %v188, 0.0
        %191 = vadd.xlane.f32.xlu0 %v190
        %v192 = vpop.xlane.xlu0 %191
        %v193 = vsel %vm175, %v189, 0.0
        %194 = vadd.xlane.f32.xlu0 %v193
        %v195 = vpop.xlane.xlu0 %194
        %196 = vrot.lane.b32.xlu0 %v163, 32
        %v197 = vpop.permute.xlu0 %196
        %198 = vrot.lane.b32.xlu0 %v164, 32
        %v199 = vpop.permute.xlu0 %198
        %v202 = vmul.f32 %v163, %v197
        %v203 = vmul.f32 %v164, %v199
        %v204 = vsel %vm175, %v202, 0.0
        %205 = vadd.xlane.f32.xlu0 %v204
        %v206 = vpop.xlane.xlu0 %205
        %v207 = vsel %vm175, %v203, 0.0
        %208 = vadd.xlane.f32.xlu0 %v207
        %v209 = vpop.xlane.xlu0 %208
        %212 = vrot.lane.b32.xlu0 %v173, 96
        %v213 = vpop.permute.xlu0 %212
        %214 = vrot.lane.b32.xlu0 %v174, 96
        %v215 = vpop.permute.xlu0 %214
        %v218 = vsel %vm175, %v213, 0.0
        %219 = vadd.xlane.f32.xlu0 %v218
        %v220 = vpop.xlane.xlu0 %219
        %v221 = vsel %vm175, %v215, 0.0
        %222 = vadd.xlane.f32.xlu0 %v221
        %v223 = vpop.xlane.xlu0 %222
        %226 = vrot.lane.b32.xlu0 %v188, 96
        %v227 = vpop.permute.xlu0 %226
        %228 = vrot.lane.b32.xlu0 %v189, 96
        %v229 = vpop.permute.xlu0 %228
        %v232 = vsel %vm175, %v227, 0.0
        %233 = vadd.xlane.f32.xlu0 %v232
        %v234 = vpop.xlane.xlu0 %233
        %v235 = vsel %vm175, %v229, 0.0
        %236 = vadd.xlane.f32.xlu0 %v235
        %v237 = vpop.xlane.xlu0 %236
        %v238 = vadd.f32 %v178, 0.6931472
        %v239 = vadd.f32 %v181, 0.6931472
        %vm240 = vcmask 7168
        %v241 = vsel %vm240, %v238, %v192
        %v242 = vsel %vm240, %v239, %v195
        %vm243 = vcmask 15360
        %v244 = vsel %vm243, %v241, %v206
        %v245 = vsel %vm243, %v242, %v209
        %vm246 = vcmask 23552
        %v247 = vsel %vm246, %v244, %v220
        %v248 = vsel %vm246, %v245, %v223
        %vm249 = vcmask 31744
        %v250 = vsel %vm249, %v247, %v234
        %v251 = vsel %vm249, %v248, %v237
        %vm252 = vcmask 39936
        %v253 = vsel %vm252, %v250, -inf
        %254 = vmax.xlane.f32.xlu0 %v253
        %v255 = vpop.xlane.xlu0 %254
        %v256 = vsel %vm252, %v251, -inf
        %257 = vmax.xlane.f32.xlu0 %v256
        %v258 = vpop.xlane.xlu0 %257
        %v259 = vsub.f32 %v250, %v255
        %v260 = vsub.f32 %v251, %v258
        %v261 = vmul.f32 %v259, 1.442695
        %v262 = vpow.pop %v261
        %v263 = vmul.f32 %v260, 1.442695
        %v264 = vpow.pop %v263
        %v265 = vsel %vm252, %v262, 0.0
        %266 = vadd.xlane.f32.xlu0 %v265
        %v267 = vpop.xlane.xlu0 %266
        %v268 = vsel %vm252, %v264, 0.0
        %269 = vadd.xlane.f32.xlu0 %v268
        %v270 = vpop.xlane.xlu0 %269
        %v271 = vlog2.pop %v267
        %v272 = vmul.f32 %v271, 0.6931472
        %v273 = vlog2.pop %v270
        %v274 = vmul.f32 %v273, 0.6931472
        %v275 = vadd.f32 %v255, %v272
        %v276 = vadd.f32 %v258, %v274
        %v277 = vsub.f32 %v275, 0.6931472
        %v278 = vsub.f32 %v276, 0.6931472
        %v279 = vsub.f32 %v277, %v178
        %v280 = vsub.f32 %v278, %v181
        %v281 = vld [vmem:[#allocation2] sm:$0xff]
        %v282 = vld [vmem:[#allocation2 + $0x8] sm:$0xff]
        %v283 = vadd.f32 %v281, %v279
        %v284 = vadd.f32 %v282, %v280
        %285 = vst.msk [vmem:[#allocation2] sm:$0xff] %vm240, %v283
        %286 = vst.msk [vmem:[#allocation2 + $0x8] sm:$0xff] %vm240, %v284
        %p287 = scmp.eq.s32.totalorder %s23, 1
        // Predicated region
        $region33: #{tpu_custom_call.1} parent=23 // pred_check
          %p288 = pneg %p287
        $region34: #{tpu_custom_call.1} parent=23 // pred_check_branch
          %290 = sbr.rel (%p288) target = $region36
        $region35: #{tpu_custom_call.1} parent=23 // pred_region
          %v291 = vld [vmem:[#allocation2] sm:$0xff]
          %v292 = vld [vmem:[#allocation2 + $0x8] sm:$0xff]
          %v293 = vsel %vm240, %v291, 0.0
          %v294 = vsel %vm240, %v292, 0.0
          %v295 = vadd.f32 %v293, %v294
          %296 = vadd.xlane.f32.xlu0 %v295
          %v297 = vpop.xlane.xlu0 %296
          %v298 = vrot.slane %v297, 4
          %v299 = vadd.f32 %v297, %v298
          %v300 = vrot.slane %v299, 2
          %v301 = vadd.f32 %v299, %v300
          %v302 = vrot.slane %v301, 1
          %v303 = vadd.f32 %v301, %v302
          %s304 = vtos %v303
          %v305 = vstv %s304
          %306 = vst [vmem:[%s152] sm:$0xff] %v305
        $region36: #{tpu_custom_call.1} parent=23 // pred_fallthru
          _
        %s307 = sand.u32 %s68, 1
        %s308 = scalar_lea.sflag [#allocation5], %s307
        %s309 = sand.u32 %s68, 1
        %s310 = smul.addr %s309, 8
        %s311 = scalar_lea.vmem [#allocation6], %s310
        // Predicated region
        $region37: #{tpu_custom_call.1} parent=23 // pred_check
          %p312 = pneg %p78
        $region38: #{tpu_custom_call.1} parent=23 // pred_check_branch
          %314 = sbr.rel (%p312) target = $region40
        $region39: #{tpu_custom_call.1} parent=23 // pred_region
          %s316 = ssub.s32 128, 128
          %317 = vsyncadd %s308, %s316
          %s318 = smul.addr %s22, 128
          %s319 = scalar_lea.hbm %s1, %s318
          %s321 = sshll.u32 %s311, 4
          %s322 = int_to_ptr.vmem [resolvable:$true] %s321
          %324 = dma.vmem_to_hbm [thread:$0]  %s322, 128, %s319, %s308
        $region40: #{tpu_custom_call.1} parent=23 // pred_fallthru
          _
      $region24: #{tpu_custom_call.1} parent=5 // pred_fallthru
        _
      %p325 = scmp.le.s32.totalorder 2, %s13
      // Predicated region
      $region41: #{tpu_custom_call.1} parent=5 // pred_check
        %p326 = pneg %p325
      $region42: #{tpu_custom_call.1} parent=5 // pred_check_branch
        %328 = sbr.rel (%p326) target = $region44
      $region43: #{tpu_custom_call.1} parent=5 // pred_region
        %s329 = ssub.s32 %s13, 2
        // Predicated region
        $region45: #{tpu_custom_call.1} parent=43 // pred_check
          %p330 = pneg %p84
        $region46: #{tpu_custom_call.1} parent=43 // pred_check_branch
          %332 = sbr.rel (%p330) target = $region48
        $region47: #{tpu_custom_call.1} parent=43 // pred_region
          %s333 = sand.u32 %s69, 1
          %s334 = scalar_lea.sflag [#allocation5], %s333
          %s335 = sand.u32 %s69, 1
          %s336 = smul.addr %s335, 8
          %s337 = scalar_lea.vmem [#allocation6], %s336
          %338 = dma.done %s334, 128
        $region48: #{tpu_custom_call.1} parent=43 // pred_fallthru
          _
      $region44: #{tpu_custom_call.1} parent=5 // pred_fallthru
        _
    $region6: #{tpu_custom_call.1} parent=1 // loop_footer
      %s17 = sadd.s32 1, %s13
    $region7: #{tpu_custom_call.1} parent=1 // loop_footer_branch
      %12 = sbr.rel target = $region3
    $region8: #{tpu_custom_call.1} parent=1 // loop_exit
      _
    %339 = vsyncpa [#allocation4], 1
    %s340 = scalar_lea.sflag [#allocation4], 1
    %341 = vsyncpa %s340, 1
    %342 = vsyncpa [#allocation5], 1
    %s343 = scalar_lea.sflag [#allocation5], 1
    %344 = vsyncpa %s343, 1

</llo_original>
